<compile_context>
chip_gen: v5e
topology: v5e:2x2
jax: 0.10.0
libtpu: 0.0.40
codegen_flags: <defaults>
</compile_context>

<pallas_src>
import jax
import jax.numpy as jnp
from jax.experimental import pallas as pl
from jax.experimental.pallas import tpu as pltpu


def _round_up(x, m):
    return ((x + m - 1) // m) * m


# ----------------------------- Pallas kernels ------------------------------- #
def _detect_eval_kernel(x_ref, w_ref, bias_ref, ca_ref, cb_ref, cx_ref, cy_ref,
                        gx_ref, gy_ref, raw_ref, dec_ref):
    # x_ref:    (Cin_pad, TM)   bf16 activations (native NCHW slab)
    # w_ref:    (Cout_pad, Cin_pad) bf16 1x1-conv weight (single tile, VMEM-resident)
    # bias_ref: (Cout_pad, 1)   f32 conv bias
    # ca/cb/cx/cy_ref: (Cout_pad, 1) f32 decode coefficients
    # gx/gy_ref:(1, TM)         f32 pixel grid (x-0.5 / y-0.5) per spatial position
    # raw_ref:  (Cout_pad, TM)  bf16 raw conv output
    # dec_ref:  (Cout_pad, TM)  bf16 decoded output
    raw = jnp.dot(w_ref[...], x_ref[...],
                  preferred_element_type=jnp.float32) + bias_ref[...]
    raw_ref[...] = raw.astype(raw_ref.dtype)

    s = jax.nn.sigmoid(raw)        # EUP, f32 (safe on all generations)
    dec = (ca_ref[...] * s
           + cb_ref[...] * (s * s)
           + cx_ref[...] * gx_ref[...]
           + cy_ref[...] * gy_ref[...])
    dec_ref[...] = dec.astype(dec_ref.dtype)


def _detect_train_kernel(x_ref, w_ref, bias_ref, raw_ref):
    # Training path: conv only, no sigmoid / decode / second output buffer.
    raw_ref[...] = (jnp.dot(w_ref[...], x_ref[...],
                            preferred_element_type=jnp.float32)
                    + bias_ref[...]).astype(raw_ref.dtype)


def _detect_level(x3, w, bias, ca=None, cb=None, cx=None, cy=None,
                  gx=None, gy=None, *, tm, training=False):
    N, cin_pad, hw_pad = x3.shape
    cout_pad = w.shape[0]
    grid = (N, hw_pad // tm)

    x_spec = pl.BlockSpec((None, cin_pad, tm), lambda n, j: (n, 0, j))
    w_spec = pl.BlockSpec((cout_pad, cin_pad), lambda n, j: (0, 0))
    vec_spec = pl.BlockSpec((cout_pad, 1), lambda n, j: (0, 0))
    row_spec = pl.BlockSpec((1, tm), lambda n, j: (0, j))
    out_spec = pl.BlockSpec((None, cout_pad, tm), lambda n, j: (n, 0, j))
    out_sds = jax.ShapeDtypeStruct((N, cout_pad, hw_pad), jnp.bfloat16)

    cparams = pltpu.CompilerParams(
        dimension_semantics=("parallel", "parallel"),
        vmem_limit_bytes=16 * 1024 * 1024,   # working set is ~a few MiB even at tm=1024
    )
    mm_flops = int(2 * N * hw_pad * cin_pad * cout_pad)

    if training:
        cost = pl.CostEstimate(
            flops=mm_flops, transcendentals=0,
            bytes_accessed=int(x3.size * 2 + w.size * 2 + N * cout_pad * hw_pad * 2))
        raw = pl.pallas_call(
            _detect_train_kernel,
            out_shape=out_sds,
            grid_spec=pltpu.PrefetchScalarGridSpec(
                num_scalar_prefetch=0, grid=grid,
                in_specs=[x_spec, w_spec, vec_spec],
                out_specs=out_spec),
            compiler_params=cparams, cost_estimate=cost,
        )(x3, w, bias)
        return raw, None

    cost = pl.CostEstimate(
        flops=mm_flops, transcendentals=int(N * cout_pad * hw_pad),
        bytes_accessed=int(x3.size * 2 + w.size * 2 + 2 * N * cout_pad * hw_pad * 2))
    raw, dec = pl.pallas_call(
        _detect_eval_kernel,
        out_shape=(out_sds, out_sds),
        grid_spec=pltpu.PrefetchScalarGridSpec(
            num_scalar_prefetch=0, grid=grid,
            in_specs=[x_spec, w_spec, vec_spec, vec_spec, vec_spec, vec_spec,
                      vec_spec, row_spec, row_spec],
            out_specs=(out_spec, out_spec)),
        compiler_params=cparams, cost_estimate=cost,
    )(x3, w, bias, ca, cb, cx, cy, gx, gy)
    return raw, dec


# ------------------------------- Detect module ------------------------------ #
class DetectPallas:
    """Mirror of the PyTorch `Detect` head (1x1 convs + sigmoid + box decode)."""

    def __init__(self, nc=80, anchors=(), ch=(), stride=(8.0, 16.0, 32.0),
                 inplace=True, key=None):
        self.nc = nc
        self.no = nc + 5
        self.nl = len(anchors)
        self.na = len(anchors[0]) // 2
        self.inplace = inplace          # same math either way
        self.training = False
        self.export = False
        self.anchors = jnp.asarray(anchors, jnp.float32).reshape(self.nl, self.na, 2)
        self.stride = jnp.asarray(stride, jnp.float32)

        if key is None:
            key = jax.random.PRNGKey(0)

        cout = self.no * self.na
        self.cout_pad = _round_up(cout, 16)          # Cout is the sublane dim

        # per-channel decode coefficient masks (channel c -> anchor a = c//no, o = c%no)
        cidx = jnp.arange(self.cout_pad)
        o_idx = cidx % self.no
        a_idx = jnp.clip(cidx // self.no, 0, self.na - 1)
        valid = cidx < cout
        is_x = valid & (o_idx == 0)
        is_y = valid & (o_idx == 1)
        is_w = valid & (o_idx == 2)
        is_h = valid & (o_idx == 3)
        is_other = valid & (o_idx >= 4)

        self.weights, self.biases = [], []
        self.w_pads, self.b_pads, self.cin_pads = [], [], []
        self.coef_a, self.coef_b, self.coef_x, self.coef_y = [], [], [], []
        for i, c in enumerate(ch):
            key, kw, kb = jax.random.split(key, 3)
            bound = 1.0 / (c ** 0.5)    # nn.Conv2d default init scale
            w = jax.random.uniform(kw, (cout, c), jnp.float32, -bound, bound)
            b = jax.random.uniform(kb, (cout,), jnp.float32, -bound, bound)
            self.weights.append(w)
            self.biases.append(b)

            cin_pad = _round_up(c, 16)
            self.cin_pads.append(cin_pad)
            self.w_pads.append(jnp.zeros((self.cout_pad, cin_pad), jnp.bfloat16)
                               .at[:cout, :c].set(w.astype(jnp.bfloat16)))
            self.b_pads.append(jnp.zeros((self.cout_pad, 1), jnp.float32)
                               .at[:cout, 0].set(b))

            s_i = float(stride[i])
            anc_w = self.anchors[i, a_idx, 0]
            anc_h = self.anchors[i, a_idx, 1]
            ca = jnp.where(is_x | is_y, 2.0 * s_i, jnp.where(is_other, 1.0, 0.0))
            cb = jnp.where(is_w, 4.0 * s_i * anc_w,
                           jnp.where(is_h, 4.0 * s_i * anc_h, 0.0))
            cx = jnp.where(is_x, s_i, 0.0)
            cy = jnp.where(is_y, s_i, 0.0)
            self.coef_a.append(ca.astype(jnp.float32).reshape(-1, 1))
            self.coef_b.append(cb.astype(jnp.float32).reshape(-1, 1))
            self.coef_x.append(cx.astype(jnp.float32).reshape(-1, 1))
            self.coef_y.append(cy.astype(jnp.float32).reshape(-1, 1))

    def __call__(self, xs):
        na, no = self.na, self.no
        cout = na * no

        z, raw_outs = [], []
        for i, x in enumerate(xs):
            N, C, H, W = x.shape
            HW = H * W
            cin_pad = self.cin_pads[i]
            tm = min(1024, _round_up(HW, 128))
            hw_pad = _round_up(HW, tm)

            # NCHW -> (N, Cin, H*W) is a free view; single fused bf16-cast + pad pass.
            x3 = jnp.pad(x.reshape(N, C, HW).astype(jnp.bfloat16),
                         ((0, 0), (0, cin_pad - C), (0, hw_pad - HW)))

            if self.training:
                raw, _ = _detect_level(x3, self.w_pads[i], self.b_pads[i],
                                       tm=tm, training=True)
            else:
                # pixel-grid offsets per spatial position p = y*W + x
                p = jnp.arange(hw_pad, dtype=jnp.int32)
                gx = ((p % W).astype(jnp.float32) - 0.5).reshape(1, hw_pad)
                gy = ((p // W).astype(jnp.float32) - 0.5).reshape(1, hw_pad)
                raw, dec = _detect_level(
                    x3, self.w_pads[i], self.b_pads[i],
                    self.coef_a[i], self.coef_b[i], self.coef_x[i], self.coef_y[i],
                    gx, gy, tm=tm, training=False)

                dec = dec[:, :cout, :HW].reshape(N, na, no, H, W)
                dec = jnp.transpose(dec, (0, 1, 3, 4, 2)).astype(jnp.float32)
                z.append(dec.reshape(N, na * HW, no))

            # bf16 re-layout (read half the bytes); final f32 cast fused into the copy
            raw = raw[:, :cout, :HW].reshape(N, na, no, H, W)
            raw = jnp.transpose(raw, (0, 1, 3, 4, 2)).astype(jnp.float32)  # (bs,na,ny,nx,no)
            raw_outs.append(raw)

        if self.training:
            return raw_outs
        zc = jnp.concatenate(z, axis=1)
        return (zc,) if self.export else (zc, raw_outs)


# ------------------------------ pure-JAX reference --------------------------- #
def reference_detect(xs, det):
    z, outs = [], []
    for i, x in enumerate(xs):
        N, C, H, W = x.shape
        xf = jnp.transpose(x, (0, 2, 3, 1)).reshape(-1, C).astype(jnp.bfloat16)
        w = det.weights[i].astype(jnp.bfloat16)                  # (Cout, Cin)
        y = jnp.dot(xf, w.T, preferred_element_type=jnp.float32) + det.biases[i][None, :]
        y = jnp.transpose(y.reshape(N, H, W, det.na, det.no), (0, 3, 1, 2, 4))
        outs.append(y)
        s = jax.nn.sigmoid(y)
        yv, xv = jnp.meshgrid(jnp.arange(H, dtype=jnp.float32),
                              jnp.arange(W, dtype=jnp.float32), indexing="ij")
        grid = jnp.stack((xv, yv), -1) - 0.5                     # (H, W, 2)
        anchor_grid = (det.anchors[i] * det.stride[i]).reshape(1, det.na, 1, 1, 2)
        xy = (s[..., 0:2] * 2 + grid[None, None]) * det.stride[i]
        wh = (s[..., 2:4] * 2) ** 2 * anchor_grid
        yd = jnp.concatenate([xy, wh, s[..., 4:]], axis=-1)
        z.append(yd.reshape(N, -1, det.no))
    return jnp.concatenate(z, 1), outs


# ---------------------------------- main ------------------------------------ #
if __name__ == "__main__":
    key = jax.random.PRNGKey(0)

    nc = 3                                               # small class count for demo
    anchors = ((10, 13, 16, 30, 33, 23),
               (30, 61, 62, 45, 59, 119),
               (116, 90, 156, 198, 373, 326))
    ch = (4, 8, 16)
    spatial = (16, 8, 4)
    stride = (8.0, 16.0, 32.0)
    bs = 2

    key, kp = jax.random.split(key)
    det = DetectPallas(nc=nc, anchors=anchors, ch=ch, stride=stride, key=kp)

    xs = []
    for c, s in zip(ch, spatial):
        key, kx = jax.random.split(key)
        xs.append(jax.random.normal(kx, (bs, c, s, s), jnp.float32))

    z_ref, raw_ref = reference_detect(xs, det)

    # --- eval / inference path (fused conv + sigmoid + decode) ---
    z, raw = det(list(xs))
    z = jax.block_until_ready(z)

    total = sum(det.na * s * s for s in spatial)
    assert z.shape == (bs, total, det.no), z.shape
    # bf16-stored outputs -> loosened relative tolerance
    rel = float(jnp.max(jnp.abs(z - z_ref) / (1.0 + jnp.abs(z_ref))))
    assert rel < 2e-2, rel
    for r, rr in zip(raw, raw_ref):
        assert r.shape == rr.shape, (r.shape, rr.shape)
        rrel = float(jnp.max(jnp.abs(r - rr) / (1.0 + jnp.abs(rr))))
        assert rrel < 2e-2, rrel

    # --- training path (raw conv maps only; decode/sigmoid dropped in-kernel) ---
    det.training = True
    raw_t = det(list(xs))
    jax.block_until_ready(raw_t[0])
    for r, rr in zip(raw_t, raw_ref):
        assert r.shape == rr.shape, (r.shape, rr.shape)
        rrel = float(jnp.max(jnp.abs(r - rr) / (1.0 + jnp.abs(rr))))
        assert rrel < 2e-2, rrel
    det.training = False

    print("KERNEL_OK")
</pallas_src>

<mosaic_0001>
module attributes {stable_mosaic.version = 11 : i64} {
  func.func @_detect_eval_kernel(%arg0: i32, %arg1: i32, %arg2: memref<1x16x256xbf16, #tpu.memory_space<vmem>>, %arg3: memref<32x16xbf16, #tpu.memory_space<vmem>>, %arg4: memref<32x1xf32, #tpu.memory_space<vmem>>, %arg5: memref<32x1xf32, #tpu.memory_space<vmem>>, %arg6: memref<32x1xf32, #tpu.memory_space<vmem>>, %arg7: memref<32x1xf32, #tpu.memory_space<vmem>>, %arg8: memref<32x1xf32, #tpu.memory_space<vmem>>, %arg9: memref<1x256xf32, #tpu.memory_space<vmem>>, %arg10: memref<1x256xf32, #tpu.memory_space<vmem>>, %arg11: memref<1x32x256xbf16, #tpu.memory_space<vmem>>, %arg12: memref<1x32x256xbf16, #tpu.memory_space<vmem>>) attributes {dimension_semantics = [#tpu.dimension_semantics<parallel>, #tpu.dimension_semantics<parallel>], iteration_bounds = array<i64: 2, 1>, scalar_prefetch = 0 : i64, scratch_operands = 0 : i64, tpu.core_type = #tpu.core_type<tc>, window_params = [{transform_indices = @transform_0, window_bounds = array<i64: 1, 16, 256>}, {pipeline_mode = #tpu.pipeline_mode<synchronous>, transform_indices = @transform_1, window_bounds = array<i64: 32, 16>}, {pipeline_mode = #tpu.pipeline_mode<synchronous>, transform_indices = @transform_2, window_bounds = array<i64: 32, 1>}, {pipeline_mode = #tpu.pipeline_mode<synchronous>, transform_indices = @transform_3, window_bounds = array<i64: 32, 1>}, {pipeline_mode = #tpu.pipeline_mode<synchronous>, transform_indices = @transform_4, window_bounds = array<i64: 32, 1>}, {pipeline_mode = #tpu.pipeline_mode<synchronous>, transform_indices = @transform_5, window_bounds = array<i64: 32, 1>}, {pipeline_mode = #tpu.pipeline_mode<synchronous>, transform_indices = @transform_6, window_bounds = array<i64: 32, 1>}, {transform_indices = @transform_7, window_bounds = array<i64: 1, 256>}, {transform_indices = @transform_8, window_bounds = array<i64: 1, 256>}, {transform_indices = @transform_9, window_bounds = array<i64: 1, 32, 256>}, {transform_indices = @transform_10, window_bounds = array<i64: 1, 32, 256>}]} {
    %c0 = arith.constant 0 : index
    %c0_0 = arith.constant 0 : index
    %0 = vector.load %arg3[%c0, %c0_0] : memref<32x16xbf16, #tpu.memory_space<vmem>>, vector<32x16xbf16>
    %c0_1 = arith.constant 0 : index
    %c0_2 = arith.constant 0 : index
    %c0_3 = arith.constant 0 : index
    %1 = vector.load %arg2[%c0_1, %c0_2, %c0_3] : memref<1x16x256xbf16, #tpu.memory_space<vmem>>, vector<1x16x256xbf16>
    %2 = vector.shape_cast %1 : vector<1x16x256xbf16> to vector<16x256xbf16>
    %cst = arith.constant dense<0.000000e+00> : vector<32x256xf32>
    %3 = tpu.matmul %0, %2, %cst {dimension_numbers = #tpu.dot_dimension_numbers<[1], [0], [0], [1], [0, 0, 1, 1], [], []>} : vector<32x16xbf16>, vector<16x256xbf16>, vector<32x256xf32> -> vector<32x256xf32>
    %c0_4 = arith.constant 0 : index
    %c0_5 = arith.constant 0 : index
    %4 = vector.load %arg4[%c0_4, %c0_5] : memref<32x1xf32, #tpu.memory_space<vmem>>, vector<32x1xf32>
    %5 = vector.broadcast %4 : vector<32x1xf32> to vector<32x256xf32>
    %6 = arith.addf %3, %5 : vector<32x256xf32>
    %7 = arith.truncf %6 : vector<32x256xf32> to vector<32x256xbf16>
    %c0_6 = arith.constant 0 : index
    %c0_7 = arith.constant 0 : index
    %c0_8 = arith.constant 0 : index
    %8 = vector.load %arg11[%c0_6, %c0_7, %c0_8] : memref<1x32x256xbf16, #tpu.memory_space<vmem>>, vector<1x32x256xbf16>
    %9 = vector.shape_cast %8 : vector<1x32x256xbf16> to vector<32x256xbf16>
    %10 = vector.shape_cast %7 : vector<32x256xbf16> to vector<1x32x256xbf16>
    tpu.vector_store %arg11[%c0_6, %c0_7, %c0_8], %10 {strides = array<i32>} : memref<1x32x256xbf16, #tpu.memory_space<vmem>>, vector<1x32x256xbf16>,
    %11 = arith.negf %6 : vector<32x256xf32>
    %12 = math.exp %11 : vector<32x256xf32>
    %cst_9 = arith.constant 1.000000e+00 : f32
    %13 = vector.broadcast %cst_9 : f32 to vector<32x256xf32>
    %14 = arith.addf %13, %12 : vector<32x256xf32>
    %15 = arith.divf %13, %14 : vector<32x256xf32>
    %c0_10 = arith.constant 0 : index
    %c0_11 = arith.constant 0 : index
    %16 = vector.load %arg5[%c0_10, %c0_11] : memref<32x1xf32, #tpu.memory_space<vmem>>, vector<32x1xf32>
    %17 = vector.broadcast %16 : vector<32x1xf32> to vector<32x256xf32>
    %18 = arith.mulf %17, %15 : vector<32x256xf32>
    %c0_12 = arith.constant 0 : index
    %c0_13 = arith.constant 0 : index
    %19 = vector.load %arg6[%c0_12, %c0_13] : memref<32x1xf32, #tpu.memory_space<vmem>>, vector<32x1xf32>
    %20 = arith.mulf %15, %15 : vector<32x256xf32>
    %21 = vector.broadcast %19 : vector<32x1xf32> to vector<32x256xf32>
    %22 = arith.mulf %21, %20 : vector<32x256xf32>
    %23 = arith.addf %18, %22 : vector<32x256xf32>
    %c0_14 = arith.constant 0 : index
    %c0_15 = arith.constant 0 : index
    %24 = vector.load %arg7[%c0_14, %c0_15] : memref<32x1xf32, #tpu.memory_space<vmem>>, vector<32x1xf32>
    %c0_16 = arith.constant 0 : index
    %c0_17 = arith.constant 0 : index
    %25 = vector.load %arg9[%c0_16, %c0_17] : memref<1x256xf32, #tpu.memory_space<vmem>>, vector<1x256xf32>
    %26 = vector.broadcast %24 : vector<32x1xf32> to vector<32x256xf32>
    %27 = vector.broadcast %25 : vector<1x256xf32> to vector<32x256xf32>
    %28 = arith.mulf %26, %27 : vector<32x256xf32>
    %29 = arith.addf %23, %28 : vector<32x256xf32>
    %c0_18 = arith.constant 0 : index
    %c0_19 = arith.constant 0 : index
    %30 = vector.load %arg8[%c0_18, %c0_19] : memref<32x1xf32, #tpu.memory_space<vmem>>, vector<32x1xf32>
    %c0_20 = arith.constant 0 : index
    %c0_21 = arith.constant 0 : index
    %31 = vector.load %arg10[%c0_20, %c0_21] : memref<1x256xf32, #tpu.memory_space<vmem>>, vector<1x256xf32>
    %32 = vector.broadcast %30 : vector<32x1xf32> to vector<32x256xf32>
    %33 = vector.broadcast %31 : vector<1x256xf32> to vector<32x256xf32>
    %34 = arith.mulf %32, %33 : vector<32x256xf32>
    %35 = arith.addf %29, %34 : vector<32x256xf32>
    %36 = arith.truncf %35 : vector<32x256xf32> to vector<32x256xbf16>
    %c0_22 = arith.constant 0 : index
    %c0_23 = arith.constant 0 : index
    %c0_24 = arith.constant 0 : index
    %37 = vector.load %arg12[%c0_22, %c0_23, %c0_24] : memref<1x32x256xbf16, #tpu.memory_space<vmem>>, vector<1x32x256xbf16>
    %38 = vector.shape_cast %37 : vector<1x32x256xbf16> to vector<32x256xbf16>
    %39 = vector.shape_cast %36 : vector<32x256xbf16> to vector<1x32x256xbf16>
    tpu.vector_store %arg12[%c0_22, %c0_23, %c0_24], %39 {strides = array<i32>} : memref<1x32x256xbf16, #tpu.memory_space<vmem>>, vector<1x32x256xbf16>,
    return
  }
  func.func @transform_0(%arg0: i32, %arg1: i32) -> (i32, i32, i32) {
    %c0_i32 = arith.constant 0 : i32
    %c0_i32_0 = arith.constant 0 : i32
    return %arg0, %c0_i32, %arg1 : i32, i32, i32
  }
  func.func @transform_1(%arg0: i32, %arg1: i32) -> (i32, i32) {
    %c0_i32 = arith.constant 0 : i32
    %c0_i32_0 = arith.constant 0 : i32
    %c0_i32_1 = arith.constant 0 : i32
    return %c0_i32, %c0_i32_0 : i32, i32
  }
  func.func @transform_2(%arg0: i32, %arg1: i32) -> (i32, i32) {
    %c0_i32 = arith.constant 0 : i32
    %c0_i32_0 = arith.constant 0 : i32
    %c0_i32_1 = arith.constant 0 : i32
    return %c0_i32, %c0_i32_0 : i32, i32
  }
  func.func @transform_3(%arg0: i32, %arg1: i32) -> (i32, i32) {
    %c0_i32 = arith.constant 0 : i32
    %c0_i32_0 = arith.constant 0 : i32
    %c0_i32_1 = arith.constant 0 : i32
    return %c0_i32, %c0_i32_0 : i32, i32
  }
  func.func @transform_4(%arg0: i32, %arg1: i32) -> (i32, i32) {
    %c0_i32 = arith.constant 0 : i32
    %c0_i32_0 = arith.constant 0 : i32
    %c0_i32_1 = arith.constant 0 : i32
    return %c0_i32, %c0_i32_0 : i32, i32
  }
  func.func @transform_5(%arg0: i32, %arg1: i32) -> (i32, i32) {
    %c0_i32 = arith.constant 0 : i32
    %c0_i32_0 = arith.constant 0 : i32
    %c0_i32_1 = arith.constant 0 : i32
    return %c0_i32, %c0_i32_0 : i32, i32
  }
  func.func @transform_6(%arg0: i32, %arg1: i32) -> (i32, i32) {
    %c0_i32 = arith.constant 0 : i32
    %c0_i32_0 = arith.constant 0 : i32
    %c0_i32_1 = arith.constant 0 : i32
    return %c0_i32, %c0_i32_0 : i32, i32
  }
  func.func @transform_7(%arg0: i32, %arg1: i32) -> (i32, i32) {
    %c0_i32 = arith.constant 0 : i32
    %c0_i32_0 = arith.constant 0 : i32
    return %c0_i32, %arg1 : i32, i32
  }
  func.func @transform_8(%arg0: i32, %arg1: i32) -> (i32, i32) {
    %c0_i32 = arith.constant 0 : i32
    %c0_i32_0 = arith.constant 0 : i32
    return %c0_i32, %arg1 : i32, i32
  }
  func.func @transform_9(%arg0: i32, %arg1: i32) -> (i32, i32, i32) {
    %c0_i32 = arith.constant 0 : i32
    %c0_i32_0 = arith.constant 0 : i32
    return %arg0, %c0_i32, %arg1 : i32, i32, i32
  }
  func.func @transform_10(%arg0: i32, %arg1: i32) -> (i32, i32, i32) {
    %c0_i32 = arith.constant 0 : i32
    %c0_i32_0 = arith.constant 0 : i32
    return %arg0, %c0_i32, %arg1 : i32, i32, i32
  }
}

</mosaic_0001>

<llo_original>
// kernel: tpu_custom_call.1
$region0: #{tpu_custom_call.1}
  #allocation0 [shape = 'u32[]', space=smem, size = 0x4, offset = 0x4, fixed_abs, tag = 'smem constant byte address 0x4 - core index']
  #allocation1 [shape = 'u32[72,128]{1,0:T(1,128)}', space=vmem, size = 0x9000, scoped, tag = 'internal scratch']
  %s0 = inlined_call_operand.vmem [shape: bf16[2,16,256], index: 0, kind: input, shape index: {}]
  %s1 = inlined_call_operand.vmem [shape: bf16[32,16], index: 1, kind: input, shape index: {}]
  %s2 = inlined_call_operand.vmem [shape: f32[32,1], index: 2, kind: input, shape index: {}]
  %s3 = inlined_call_operand.vmem [shape: f32[32,1], index: 3, kind: input, shape index: {}]
  %s4 = inlined_call_operand.vmem [shape: f32[32,1], index: 4, kind: input, shape index: {}]
  %s5 = inlined_call_operand.vmem [shape: f32[32,1], index: 5, kind: input, shape index: {}]
  %s6 = inlined_call_operand.vmem [shape: f32[32,1], index: 6, kind: input, shape index: {}]
  %s7 = inlined_call_operand.vmem [shape: f32[1,256], index: 7, kind: input, shape index: {}]
  %s8 = inlined_call_operand.vmem [shape: f32[1,256], index: 8, kind: input, shape index: {}]
  %s9 = inlined_call_operand.hbm [shape: bf16[2,32,256], index: 9, kind: output, shape index: {0}]
  %s10 = inlined_call_operand.hbm [shape: bf16[2,32,256], index: 10, kind: output, shape index: {1}]
  %11 = xla_tuple %s9, %s10
  %s12 = sld [smem:[#allocation0]]
  $region77: #{tpu_custom_call.1} parent=0
    _
  %s14 = ssub.s32 1, %s12
  %s15 = scalar_select 0, %s14, %s12
  $region1: #{tpu_custom_call.1} parent=0
    #allocation2 [shape = 'u8[32768]{0}', space=vmem, size = 0x8000, scoped, tag = 'output window, operand 0']
    #allocation3 [shape = 's32[2]{0}', space=sflag, size = 0x8, scoped, tag = 'scoped memory for tpu_custom_call.1']
    #allocation4 [shape = 'u8[32768]{0}', space=vmem, size = 0x8000, scoped, tag = 'output window, operand 1']
    #allocation5 [shape = 's32[2]{0}', space=sflag, size = 0x8, scoped, tag = 'scoped memory for tpu_custom_call.1']
    %16 = vsyncpa [#allocation3], 0
    %s17 = scalar_lea.sflag [#allocation3], 1
    %18 = vsyncpa %s17, 0
    %19 = vsyncpa [#allocation5], 0
    %s20 = scalar_lea.sflag [#allocation5], 1
    %21 = vsyncpa %s20, 0
    loop: start=0, step=1, limit=4
    $region2: #{tpu_custom_call.1} parent=1 // loop_pre_header
      _
    $region3: #{tpu_custom_call.1} parent=1 // loop_header
      %s23 = sphi 0, %s27
      %p24 = scmp.ge.s32.totalorder %s23, 4
      %s30 = sphi 0, %s42
      %s31 = sphi 0, %s38
      %s32 = sphi 0, %s30
      %s33 = sphi 0, %s31
      %s34 = sphi 0, %s32
      %s35 = sphi 0, %s33
      %s47 = sphi 0, %s49
      %s50 = sphi 0, %s47
      %s51 = sphi 0, %s50
      %s67 = sphi 0, %s51
      %s71 = sphi 0, %s71
      %s73 = sphi 0, %s71
      %s74 = sphi 0, %s73
      %s88 = sphi 0, %s74
      %s92 = sphi 0, %s92
      %s94 = sphi 0, %s92
      %s95 = sphi 0, %s94
      %s109 = sphi 0, %s95
      %s113 = sphi 0, %s113
      %s115 = sphi 0, %s113
      %s116 = sphi 0, %s115
      %s130 = sphi 0, %s116
      %s134 = sphi 0, %s134
      %s136 = sphi 0, %s134
      %s137 = sphi 0, %s136
      %s151 = sphi 0, %s137
      %s155 = sphi 0, %s155
      %s157 = sphi 0, %s155
      %s158 = sphi 0, %s157
      %s172 = sphi 0, %s158
      %s176 = sphi 0, %s176
      %s178 = sphi 0, %s176
      %s179 = sphi 0, %s178
      %s193 = sphi 0, %s179
      %s199 = sphi 0, %s201
      %s202 = sphi 0, %s199
      %s203 = sphi 0, %s202
      %s219 = sphi 0, %s203
      %s225 = sphi 0, %s227
      %s228 = sphi 0, %s225
      %s229 = sphi 0, %s228
      %s245 = sphi 0, %s229
      %s253 = sphi 0, %s255
      %s256 = sphi 0, %s253
      %s257 = sphi 0, %s256
      %s273 = sphi 0, %s257
      %s281 = sphi 0, %s283
      %s284 = sphi 0, %s281
      %s285 = sphi 0, %s284
      %s301 = sphi 0, %s285
    $region4: #{tpu_custom_call.1} parent=1 // loop_header_branch
      %26 = sbr.rel (%p24) target = $region8
    $region5: #{tpu_custom_call.1} parent=1 // loop_body
      %s28 = ssub.s32 %s23, 1
      %s29 = ssub.s32 %s23, 2
      %s36 = sadd.s32 1, %s31
      %p37 = scmp.ge.s32.totalorder %s36, 1
      %s38 = scalar_select %p37, 0, %s36
      %s39 = sadd.s32 1, %s30
      %s40 = scalar_select %p37, %s39, %s30
      %p41 = scmp.ge.s32.totalorder %s40, 2
      %s42 = scalar_select %p41, 0, %s40
      %s43 = ssub.s32 %s30, %s42
      %s44 = ssub.s32 %s31, %s38
      %s45 = sor.u32 %s43, %s44
      %p46 = scmp.eq.s32.totalorder %s45, 0
      %s48 = sadd.s32 %s47, 1
      %s49 = scalar_select %p46, %s47, %s48
      %p52 = pneg %p46
      %p53 = scmp.eq.s32.totalorder %s23, 1
      %p54 = por %p52, %p53
      %p55 = scmp.ne.s32.totalorder %s47, %s50
      %p56 = scmp.eq.s32.totalorder %s23, 0
      %p57 = por %p55, %p56
      %p58 = scmp.ne.s32.totalorder %s47, %s50
      %p59 = scmp.eq.s32.totalorder %s28, 1
      %p60 = por %p58, %p59
      %p61 = scmp.ne.s32.totalorder %s50, %s51
      %p62 = scmp.eq.s32.totalorder %s28, 0
      %p63 = por %p61, %p62
      %p64 = scmp.ne.s32.totalorder %s50, %s51
      %p65 = scmp.eq.s32.totalorder %s29, 1
      %p66 = por %p64, %p65
      %p68 = scmp.ne.s32.totalorder %s51, %s67
      %p69 = scmp.eq.s32.totalorder %s29, 0
      %p70 = por %p68, %p69
      %s72 = sadd.s32 %s71, 1
      %p75 = scmp.eq.s32.totalorder %s23, 1
      %p76 = scmp.ne.s32.totalorder %s71, %s73
      %p77 = scmp.eq.s32.totalorder %s23, 0
      %p78 = por %p76, %p77
      %p79 = scmp.ne.s32.totalorder %s71, %s73
      %p80 = scmp.eq.s32.totalorder %s28, 1
      %p81 = por %p79, %p80
      %p82 = scmp.ne.s32.totalorder %s73, %s74
      %p83 = scmp.eq.s32.totalorder %s28, 0
      %p84 = por %p82, %p83
      %p85 = scmp.ne.s32.totalorder %s73, %s74
      %p86 = scmp.eq.s32.totalorder %s29, 1
      %p87 = por %p85, %p86
      %p89 = scmp.ne.s32.totalorder %s74, %s88
      %p90 = scmp.eq.s32.totalorder %s29, 0
      %p91 = por %p89, %p90
      %s93 = sadd.s32 %s92, 1
      %p96 = scmp.eq.s32.totalorder %s23, 1
      %p97 = scmp.ne.s32.totalorder %s92, %s94
      %p98 = scmp.eq.s32.totalorder %s23, 0
      %p99 = por %p97, %p98
      %p100 = scmp.ne.s32.totalorder %s92, %s94
      %p101 = scmp.eq.s32.totalorder %s28, 1
      %p102 = por %p100, %p101
      %p103 = scmp.ne.s32.totalorder %s94, %s95
      %p104 = scmp.eq.s32.totalorder %s28, 0
      %p105 = por %p103, %p104
      %p106 = scmp.ne.s32.totalorder %s94, %s95
      %p107 = scmp.eq.s32.totalorder %s29, 1
      %p108 = por %p106, %p107
      %p110 = scmp.ne.s32.totalorder %s95, %s109
      %p111 = scmp.eq.s32.totalorder %s29, 0
      %p112 = por %p110, %p111
      %s114 = sadd.s32 %s113, 1
      %p117 = scmp.eq.s32.totalorder %s23, 1
      %p118 = scmp.ne.s32.totalorder %s113, %s115
      %p119 = scmp.eq.s32.totalorder %s23, 0
      %p120 = por %p118, %p119
      %p121 = scmp.ne.s32.totalorder %s113, %s115
      %p122 = scmp.eq.s32.totalorder %s28, 1
      %p123 = por %p121, %p122
      %p124 = scmp.ne.s32.totalorder %s115, %s116
      %p125 = scmp.eq.s32.totalorder %s28, 0
      %p126 = por %p124, %p125
      %p127 = scmp.ne.s32.totalorder %s115, %s116
      %p128 = scmp.eq.s32.totalorder %s29, 1
      %p129 = por %p127, %p128
      %p131 = scmp.ne.s32.totalorder %s116, %s130
      %p132 = scmp.eq.s32.totalorder %s29, 0
      %p133 = por %p131, %p132
      %s135 = sadd.s32 %s134, 1
      %p138 = scmp.eq.s32.totalorder %s23, 1
      %p139 = scmp.ne.s32.totalorder %s134, %s136
      %p140 = scmp.eq.s32.totalorder %s23, 0
      %p141 = por %p139, %p140
      %p142 = scmp.ne.s32.totalorder %s134, %s136
      %p143 = scmp.eq.s32.totalorder %s28, 1
      %p144 = por %p142, %p143
      %p145 = scmp.ne.s32.totalorder %s136, %s137
      %p146 = scmp.eq.s32.totalorder %s28, 0
      %p147 = por %p145, %p146
      %p148 = scmp.ne.s32.totalorder %s136, %s137
      %p149 = scmp.eq.s32.totalorder %s29, 1
      %p150 = por %p148, %p149
      %p152 = scmp.ne.s32.totalorder %s137, %s151
      %p153 = scmp.eq.s32.totalorder %s29, 0
      %p154 = por %p152, %p153
      %s156 = sadd.s32 %s155, 1
      %p159 = scmp.eq.s32.totalorder %s23, 1
      %p160 = scmp.ne.s32.totalorder %s155, %s157
      %p161 = scmp.eq.s32.totalorder %s23, 0
      %p162 = por %p160, %p161
      %p163 = scmp.ne.s32.totalorder %s155, %s157
      %p164 = scmp.eq.s32.totalorder %s28, 1
      %p165 = por %p163, %p164
      %p166 = scmp.ne.s32.totalorder %s157, %s158
      %p167 = scmp.eq.s32.totalorder %s28, 0
      %p168 = por %p166, %p167
      %p169 = scmp.ne.s32.totalorder %s157, %s158
      %p170 = scmp.eq.s32.totalorder %s29, 1
      %p171 = por %p169, %p170
      %p173 = scmp.ne.s32.totalorder %s158, %s172
      %p174 = scmp.eq.s32.totalorder %s29, 0
      %p175 = por %p173, %p174
      %s177 = sadd.s32 %s176, 1
      %p180 = scmp.eq.s32.totalorder %s23, 1
      %p181 = scmp.ne.s32.totalorder %s176, %s178
      %p182 = scmp.eq.s32.totalorder %s23, 0
      %p183 = por %p181, %p182
      %p184 = scmp.ne.s32.totalorder %s176, %s178
      %p185 = scmp.eq.s32.totalorder %s28, 1
      %p186 = por %p184, %p185
      %p187 = scmp.ne.s32.totalorder %s178, %s179
      %p188 = scmp.eq.s32.totalorder %s28, 0
      %p189 = por %p187, %p188
      %p190 = scmp.ne.s32.totalorder %s178, %s179
      %p191 = scmp.eq.s32.totalorder %s29, 1
      %p192 = por %p190, %p191
      %p194 = scmp.ne.s32.totalorder %s179, %s193
      %p195 = scmp.eq.s32.totalorder %s29, 0
      %p196 = por %p194, %p195
      %s197 = ssub.s32 %s31, %s38
      %p198 = scmp.eq.s32.totalorder %s197, 0
      %s200 = sadd.s32 %s199, 1
      %s201 = scalar_select %p198, %s199, %s200
      %p204 = pneg %p198
      %p205 = scmp.eq.s32.totalorder %s23, 1
      %p206 = por %p204, %p205
      %p207 = scmp.ne.s32.totalorder %s199, %s202
      %p208 = scmp.eq.s32.totalorder %s23, 0
      %p209 = por %p207, %p208
      %p210 = scmp.ne.s32.totalorder %s199, %s202
      %p211 = scmp.eq.s32.totalorder %s28, 1
      %p212 = por %p210, %p211
      %p213 = scmp.ne.s32.totalorder %s202, %s203
      %p214 = scmp.eq.s32.totalorder %s28, 0
      %p215 = por %p213, %p214
      %p216 = scmp.ne.s32.totalorder %s202, %s203
      %p217 = scmp.eq.s32.totalorder %s29, 1
      %p218 = por %p216, %p217
      %p220 = scmp.ne.s32.totalorder %s203, %s219
      %p221 = scmp.eq.s32.totalorder %s29, 0
      %p222 = por %p220, %p221
      %s223 = ssub.s32 %s31, %s38
      %p224 = scmp.eq.s32.totalorder %s223, 0
      %s226 = sadd.s32 %s225, 1
      %s227 = scalar_select %p224, %s225, %s226
      %p230 = pneg %p224
      %p231 = scmp.eq.s32.totalorder %s23, 1
      %p232 = por %p230, %p231
      %p233 = scmp.ne.s32.totalorder %s225, %s228
      %p234 = scmp.eq.s32.totalorder %s23, 0
      %p235 = por %p233, %p234
      %p236 = scmp.ne.s32.totalorder %s225, %s228
      %p237 = scmp.eq.s32.totalorder %s28, 1
      %p238 = por %p236, %p237
      %p239 = scmp.ne.s32.totalorder %s228, %s229
      %p240 = scmp.eq.s32.totalorder %s28, 0
      %p241 = por %p239, %p240
      %p242 = scmp.ne.s32.totalorder %s228, %s229
      %p243 = scmp.eq.s32.totalorder %s29, 1
      %p244 = por %p242, %p243
      %p246 = scmp.ne.s32.totalorder %s229, %s245
      %p247 = scmp.eq.s32.totalorder %s29, 0
      %p248 = por %p246, %p247
      %s249 = ssub.s32 %s30, %s42
      %s250 = ssub.s32 %s31, %s38
      %s251 = sor.u32 %s249, %s250
      %p252 = scmp.eq.s32.totalorder %s251, 0
      %s254 = sadd.s32 %s253, 1
      %s255 = scalar_select %p252, %s253, %s254
      %p258 = pneg %p252
      %p259 = scmp.eq.s32.totalorder %s23, 1
      %p260 = por %p258, %p259
      %p261 = scmp.ne.s32.totalorder %s253, %s256
      %p262 = scmp.eq.s32.totalorder %s23, 0
      %p263 = por %p261, %p262
      %p264 = scmp.ne.s32.totalorder %s253, %s256
      %p265 = scmp.eq.s32.totalorder %s28, 1
      %p266 = por %p264, %p265
      %p267 = scmp.ne.s32.totalorder %s256, %s257
      %p268 = scmp.eq.s32.totalorder %s28, 0
      %p269 = por %p267, %p268
      %p270 = scmp.ne.s32.totalorder %s256, %s257
      %p271 = scmp.eq.s32.totalorder %s29, 1
      %p272 = por %p270, %p271
      %p274 = scmp.ne.s32.totalorder %s257, %s273
      %p275 = scmp.eq.s32.totalorder %s29, 0
      %p276 = por %p274, %p275
      %s277 = ssub.s32 %s30, %s42
      %s278 = ssub.s32 %s31, %s38
      %s279 = sor.u32 %s277, %s278
      %p280 = scmp.eq.s32.totalorder %s279, 0
      %s282 = sadd.s32 %s281, 1
      %s283 = scalar_select %p280, %s281, %s282
      %p286 = pneg %p280
      %p287 = scmp.eq.s32.totalorder %s23, 1
      %p288 = por %p286, %p287
      %p289 = scmp.ne.s32.totalorder %s281, %s284
      %p290 = scmp.eq.s32.totalorder %s23, 0
      %p291 = por %p289, %p290
      %p292 = scmp.ne.s32.totalorder %s281, %s284
      %p293 = scmp.eq.s32.totalorder %s28, 1
      %p294 = por %p292, %p293
      %p295 = scmp.ne.s32.totalorder %s284, %s285
      %p296 = scmp.eq.s32.totalorder %s28, 0
      %p297 = por %p295, %p296
      %p298 = scmp.ne.s32.totalorder %s284, %s285
      %p299 = scmp.eq.s32.totalorder %s29, 1
      %p300 = por %p298, %p299
      %p302 = scmp.ne.s32.totalorder %s285, %s301
      %p303 = scmp.eq.s32.totalorder %s29, 0
      %p304 = por %p302, %p303
      %p305 = scmp.le.s32.totalorder 1, %s23
      %p306 = scmp.lt.s32.totalorder %s23, 3
      %p307 = pnand %p305, %p306
      %p308 = pneg %p307
      // Predicated region
      $region9: #{tpu_custom_call.1} parent=5 // pred_check
        _
      $region10: #{tpu_custom_call.1} parent=5 // pred_check_branch
        %310 = sbr.rel (%p307) target = $region12
      $region11: #{tpu_custom_call.1} parent=5 // pred_region
        %s311 = ssub.s32 %s23, 1
        // Predicated region
        $region13: #{tpu_custom_call.1} parent=11 // pred_check
          %p312 = pneg %p84
        $region14: #{tpu_custom_call.1} parent=11 // pred_check_branch
          %314 = sbr.rel (%p312) target = $region16
        $region15: #{tpu_custom_call.1} parent=11 // pred_region
          _
        $region16: #{tpu_custom_call.1} parent=11 // pred_fallthru
          _
        // Predicated region
        $region17: #{tpu_custom_call.1} parent=11 // pred_check
          %p315 = pneg %p105
        $region18: #{tpu_custom_call.1} parent=11 // pred_check_branch
          %317 = sbr.rel (%p315) target = $region20
        $region19: #{tpu_custom_call.1} parent=11 // pred_region
          _
        $region20: #{tpu_custom_call.1} parent=11 // pred_fallthru
          _
        // Predicated region
        $region21: #{tpu_custom_call.1} parent=11 // pred_check
          %p318 = pneg %p126
        $region22: #{tpu_custom_call.1} parent=11 // pred_check_branch
          %320 = sbr.rel (%p318) target = $region24
        $region23: #{tpu_custom_call.1} parent=11 // pred_region
          _
        $region24: #{tpu_custom_call.1} parent=11 // pred_fallthru
          _
        // Predicated region
        $region25: #{tpu_custom_call.1} parent=11 // pred_check
          %p321 = pneg %p147
        $region26: #{tpu_custom_call.1} parent=11 // pred_check_branch
          %323 = sbr.rel (%p321) target = $region28
        $region27: #{tpu_custom_call.1} parent=11 // pred_region
          _
        $region28: #{tpu_custom_call.1} parent=11 // pred_fallthru
          _
        // Predicated region
        $region29: #{tpu_custom_call.1} parent=11 // pred_check
          %p324 = pneg %p168
        $region30: #{tpu_custom_call.1} parent=11 // pred_check_branch
          %326 = sbr.rel (%p324) target = $region32
        $region31: #{tpu_custom_call.1} parent=11 // pred_region
          _
        $region32: #{tpu_custom_call.1} parent=11 // pred_fallthru
          _
        // Predicated region
        $region33: #{tpu_custom_call.1} parent=11 // pred_check
          %p327 = pneg %p189
        $region34: #{tpu_custom_call.1} parent=11 // pred_check_branch
          %329 = sbr.rel (%p327) target = $region36
        $region35: #{tpu_custom_call.1} parent=11 // pred_region
          _
        $region36: #{tpu_custom_call.1} parent=11 // pred_fallthru
          _
        // Predicated region
        $region37: #{tpu_custom_call.1} parent=11 // pred_check
          %p330 = pneg %p215
        $region38: #{tpu_custom_call.1} parent=11 // pred_check_branch
          %332 = sbr.rel (%p330) target = $region40
        $region39: #{tpu_custom_call.1} parent=11 // pred_region
          %s333 = smul.u32 2, %s33
          %p334 = scmp.lt.s32.totalorder %s333, 1
          %s335 = scalar_select %p334, %s333, 1
          %s336 = scalar_lea.vmem %s7, %s335
          %s337 = smul.u32 2, %s33
        $region40: #{tpu_custom_call.1} parent=11 // pred_fallthru
          _
        // Predicated region
        $region41: #{tpu_custom_call.1} parent=11 // pred_check
          %p338 = pneg %p241
        $region42: #{tpu_custom_call.1} parent=11 // pred_check_branch
          %340 = sbr.rel (%p338) target = $region44
        $region43: #{tpu_custom_call.1} parent=11 // pred_region
          %s341 = smul.u32 2, %s33
          %p342 = scmp.lt.s32.totalorder %s341, 1
          %s343 = scalar_select %p342, %s341, 1
          %s344 = scalar_lea.vmem %s8, %s343
          %s345 = smul.u32 2, %s33
        $region44: #{tpu_custom_call.1} parent=11 // pred_fallthru
          _
      $region12: #{tpu_custom_call.1} parent=5 // pred_fallthru
        _
      %p346 = scmp.lt.s32.totalorder %s23, 2
      // Predicated region
      $region45: #{tpu_custom_call.1} parent=5 // pred_check
        %p347 = pneg %p346
      $region46: #{tpu_custom_call.1} parent=5 // pred_check_branch
        %349 = sbr.rel (%p347) target = $region48
      $region47: #{tpu_custom_call.1} parent=5 // pred_region
        // Predicated region
        $region49: #{tpu_custom_call.1} parent=47 // pred_check
          %p350 = pneg %p57
        $region50: #{tpu_custom_call.1} parent=47 // pred_check_branch
          %352 = sbr.rel (%p350) target = $region52
        $region51: #{tpu_custom_call.1} parent=47 // pred_region
          %s353 = smul.u32 2, %s31
          %p354 = scmp.lt.s32.totalorder %s30, 1
          %s355 = scalar_select %p354, %s30, 1
          %p356 = scmp.lt.s32.totalorder %s353, 1
          %s357 = scalar_select %p356, %s353, 1
          %s358 = smul.addr %s355, 4
          %s359 = sadd.s32 %s357, %s358
          %s360 = smul.addr %s359, 4
          %s361 = scalar_lea.vmem %s0, %s360
          %s362 = smul.u32 2, %s31
        $region52: #{tpu_custom_call.1} parent=47 // pred_fallthru
          _
      $region48: #{tpu_custom_call.1} parent=5 // pred_fallthru
        _
      %p363 = scmp.le.s32.totalorder 1, %s23
      %p364 = scmp.lt.s32.totalorder %s23, 3
      %p365 = pnand %p363, %p364
      %p366 = pneg %p365
      // Predicated region
      $region53: #{tpu_custom_call.1} parent=5 // pred_check
        _
      $region54: #{tpu_custom_call.1} parent=5 // pred_check_branch
        %368 = sbr.rel (%p365) target = $region56
      $region55: #{tpu_custom_call.1} parent=5 // pred_region
        %s369 = ssub.s32 %s23, 1
        %s370 = smul.u32 2, %s33
        %p371 = scmp.lt.s32.totalorder %s32, 1
        %s372 = scalar_select %p371, %s32, 1
        %p373 = scmp.lt.s32.totalorder %s370, 1
        %s374 = scalar_select %p373, %s370, 1
        %s375 = smul.addr %s372, 4
        %s376 = sadd.s32 %s374, %s375
        %s377 = smul.addr %s376, 4
        %s378 = scalar_lea.vmem %s0, %s377
        %p379 = pneg %p63
        %p380 = pneg %p60
        %p381 = pneg %p84
        %p382 = pneg %p81
        %p383 = pneg %p105
        %p384 = pneg %p102
        %p385 = pneg %p126
        %p386 = pneg %p123
        %p387 = pneg %p147
        %p388 = pneg %p144
        %p389 = pneg %p168
        %p390 = pneg %p165
        %p391 = pneg %p189
        %p392 = pneg %p186
        %s393 = smul.u32 2, %s33
        %p394 = scmp.lt.s32.totalorder %s393, 1
        %s395 = scalar_select %p394, %s393, 1
        %s396 = scalar_lea.vmem %s7, %s395
        %p397 = pneg %p215
        %p398 = pneg %p212
        %s399 = smul.u32 2, %s33
        %p400 = scmp.lt.s32.totalorder %s399, 1
        %s401 = scalar_select %p400, %s399, 1
        %s402 = scalar_lea.vmem %s8, %s401
        %p403 = pneg %p241
        %p404 = pneg %p238
        %p405 = pneg %p269
        %p406 = pneg %p266
        %s407 = sand.u32 %s256, 1
        %s408 = scalar_lea.sflag [#allocation3], %s407
        %s409 = sand.u32 %s256, 1
        %s410 = smul.addr %s409, 32
        %s411 = scalar_lea.vmem [#allocation2], %s410
        %p412 = pneg %p297
        %p413 = pneg %p294
        %s414 = sand.u32 %s284, 1
        %s415 = scalar_lea.sflag [#allocation5], %s414
        %s416 = sand.u32 %s284, 1
        %s417 = smul.addr %s416, 32
        %s418 = scalar_lea.vmem [#allocation4], %s417
        %s419 = smul.u32 2, %s33
        %p420 = scmp.lt.s32.totalorder %s32, 1
        %s421 = scalar_select %p420, %s32, 1
        %p422 = scmp.lt.s32.totalorder %s419, 1
        %s423 = scalar_select %p422, %s419, 1
        %s424 = smul.addr %s421, 4
        %s425 = sadd.s32 %s423, %s424
        %s426 = smul.addr %s425, 4
        %s427 = scalar_lea.vmem %s0, %s426
        %s428 = smul.u32 2, %s33
        %s429 = smul.u32 2, %s33
        %p430 = scmp.lt.s32.totalorder %s429, 1
        %s431 = scalar_select %p430, %s429, 1
        %s432 = scalar_lea.vmem %s7, %s431
        %s433 = smul.u32 2, %s33
        %s434 = smul.u32 2, %s33
        %p435 = scmp.lt.s32.totalorder %s434, 1
        %s436 = scalar_select %p435, %s434, 1
        %s437 = scalar_lea.vmem %s8, %s436
        %s438 = smul.u32 2, %s33
        %s439 = smul.u32 2, %s33
        %s440 = smul.u32 2, %s33
        %v442 = vld [vmem:[%s1] sm:$0xf]
        %v443 = vld [vmem:[%s1 + $0x4] sm:$0xf]
        %v444 = vld [vmem:[%s1 + $0x8] sm:$0xf]
        %v445 = vld [vmem:[%s1 + $0xc] sm:$0xf]
        %v446 = vld [vmem:[%s427] sm:$0xff]
        %v447 = vld [vmem:[%s427 + $0x8] sm:$0xff]
        %v448 = vld [vmem:[%s2] sm:$0xff]
        %v449 = vld [vmem:[%s2 + $0x8] sm:$0xff]
        %v450 = vld [vmem:[%s2 + $0x10] sm:$0xff]
        %v451 = vld [vmem:[%s2 + $0x18] sm:$0xff]
        %453 = vset.pattern.permute.xlu0 0
        %454 = vperm.xlu0 %453, %v448
        %v455 = vpop.permute.xlu0 %454
        %458 = vset.pattern.permute.xlu0 0
        %459 = vperm.xlu0 %458, %v449
        %v460 = vpop.permute.xlu0 %459
        %463 = vset.pattern.permute.xlu0 0
        %464 = vperm.xlu0 %463, %v450
        %v465 = vpop.permute.xlu0 %464
        %468 = vset.pattern.permute.xlu0 0
        %469 = vperm.xlu0 %468, %v451
        %v470 = vpop.permute.xlu0 %469
        %v476 = vunpack.c.l.b16 %v442
        %v477 = vunpack.c.l.b16 %v443
        %v478 = vunpack.c.l.b16 %v444
        %v479 = vunpack.c.l.b16 %v445
        %v480 = vpack.c.b16 %v477, %v476
        %v481 = vpack.c.b16 %v479, %v478
        %v484 = vunpack.c.l.b16 %v446
        %v485 = vunpack.c.h.b16 %v446
        %v486 = vunpack.c.l.b16 %v447
        %v487 = vunpack.c.h.b16 %v447
        %v488 = vpack.c.b16 %v486, %v484
        %v489 = vpack.c.b16 %v487, %v485
        %vm492 = vcmask 130048
        %v494 = vsel %vm492, %v480, 0
        %v497 = vsel %vm492, %v481, 0
        %499 = vmatpush.bf16.msra.mxu0 0
        %500 = vmatpush.bf16.msra.mxu0 0
        %501 = vmatpush.bf16.msra.mxu0 0
        %502 = vmatpush.bf16.msra.mxu0 0
        %503 = vmatpush.bf16.msra.mxu0 0
        %504 = vmatpush.bf16.msra.mxu0 0
        %505 = vmatpush.bf16.msra.mxu0 0
        %506 = vmatpush.bf16.msra.mxu0 %v488
        %507 = vmatmul.bf16.gmra.mxu0 %v494
        %v508 = vpop.f32.mrf.mxu0
        %v509 = vadd.f32 %v455, %v508
        %v510 = vpop.f32.mrf.mxu0
        %v511 = vadd.f32 %v460, %v510
        %512 = vmatmul.bf16.gmra.mxu0 %v497
        %v513 = vpop.f32.mrf.mxu0
        %v514 = vadd.f32 %v465, %v513
        %v515 = vpop.f32.mrf.mxu0
        %v516 = vadd.f32 %v470, %v515
        %517 = vdwg.mxu0
        %518 = vmatpush.bf16.msra.mxu0 0
        %519 = vmatpush.bf16.msra.mxu0 0
        %520 = vmatpush.bf16.msra.mxu0 0
        %521 = vmatpush.bf16.msra.mxu0 0
        %522 = vmatpush.bf16.msra.mxu0 0
        %523 = vmatpush.bf16.msra.mxu0 0
        %524 = vmatpush.bf16.msra.mxu0 0
        %525 = vmatpush.bf16.msra.mxu0 %v489
        %526 = vmatmul.bf16.gmra.mxu0 %v494
        %v527 = vpop.f32.mrf.mxu0
        %v528 = vadd.f32 %v455, %v527
        %v529 = vpop.f32.mrf.mxu0
        %v530 = vadd.f32 %v460, %v529
        %531 = vmatmul.bf16.gmra.mxu0 %v497
        %v532 = vpop.f32.mrf.mxu0
        %v533 = vadd.f32 %v465, %v532
        %v534 = vpop.f32.mrf.mxu0
        %v535 = vadd.f32 %v470, %v534
        %536 = vdwg.mxu0
        %v537 = vpack.c.bf16 %v528, %v509
        %v538 = vpack.c.bf16 %v530, %v511
        %v539 = vpack.c.bf16 %v533, %v514
        %v540 = vpack.c.bf16 %v535, %v516
        %541 = vst [vmem:[%s411] sm:$0xff] %v537
        %542 = vst [vmem:[%s411 + $0x8] sm:$0xff] %v538
        %543 = vst [vmem:[%s411 + $0x10] sm:$0xff] %v539
        %544 = vst [vmem:[%s411 + $0x18] sm:$0xff] %v540
        %v545 = vxor.u32 %v509, 2147483648
        %v546 = vxor.u32 %v528, 2147483648
        %v547 = vxor.u32 %v511, 2147483648
        %v548 = vxor.u32 %v530, 2147483648
        %v549 = vxor.u32 %v514, 2147483648
        %v550 = vxor.u32 %v533, 2147483648
        %v551 = vxor.u32 %v516, 2147483648
        %v552 = vxor.u32 %v535, 2147483648
        %v553 = vmul.f32 %v545, 1.442695
        %v554 = vpow.pop %v553
        %v555 = vmul.f32 %v546, 1.442695
        %v556 = vpow.pop %v555
        %v557 = vmul.f32 %v547, 1.442695
        %v558 = vpow.pop %v557
        %v559 = vmul.f32 %v548, 1.442695
        %v560 = vpow.pop %v559
        %v561 = vmul.f32 %v549, 1.442695
        %v562 = vpow.pop %v561
        %v563 = vmul.f32 %v550, 1.442695
        %v564 = vpow.pop %v563
        %v565 = vmul.f32 %v551, 1.442695
        %v566 = vpow.pop %v565
        %v567 = vmul.f32 %v552, 1.442695
        %v568 = vpow.pop %v567
        %v569 = vadd.f32 %v554, 1.0
        %v570 = vadd.f32 %v556, 1.0
        %v571 = vadd.f32 %v558, 1.0
        %v572 = vadd.f32 %v560, 1.0
        %v573 = vadd.f32 %v562, 1.0
        %v574 = vadd.f32 %v564, 1.0
        %v575 = vadd.f32 %v566, 1.0
        %v576 = vadd.f32 %v568, 1.0
        %v577 = vrcp.pop %v569
        %v578 = vmul.f32 %v569, %v577
        %v579 = vsub.f32 1.0, %v578
        %v580 = vmul.f32 %v577, %v579
        %v581 = vadd.f32 %v577, %v580
        %vm582 = vweird.f32 %v569
        %vm583 = vweird.f32 %v577
        %vm584 = vmor %vm582, %vm583
        %v585 = vsel %vm584, %v577, %v581
        %v586 = vand.u32 2147483647, %v569
        %vm587 = vcmp.eq.f32.partialorder %v586, 8.507059e+37
        %v588 = vand.u32 %v569, 2147483648
        %v589 = vor.u32 1.1754944e-38, %v588
        %v590 = vsel %vm587, %v589, %v585
        %v591 = vmul.f32 1.0, %v590
        %v592 = vrcp.pop %v570
        %v593 = vmul.f32 %v570, %v592
        %v594 = vsub.f32 1.0, %v593
        %v595 = vmul.f32 %v592, %v594
        %v596 = vadd.f32 %v592, %v595
        %vm597 = vweird.f32 %v570
        %vm598 = vweird.f32 %v592
        %vm599 = vmor %vm597, %vm598
        %v600 = vsel %vm599, %v592, %v596
        %v601 = vand.u32 2147483647, %v570
        %vm602 = vcmp.eq.f32.partialorder %v601, 8.507059e+37
        %v603 = vand.u32 %v570, 2147483648
        %v604 = vor.u32 1.1754944e-38, %v603
        %v605 = vsel %vm602, %v604, %v600
        %v606 = vmul.f32 1.0, %v605
        %v607 = vrcp.pop %v571
        %v608 = vmul.f32 %v571, %v607
        %v609 = vsub.f32 1.0, %v608
        %v610 = vmul.f32 %v607, %v609
        %v611 = vadd.f32 %v607, %v610
        %vm612 = vweird.f32 %v571
        %vm613 = vweird.f32 %v607
        %vm614 = vmor %vm612, %vm613
        %v615 = vsel %vm614, %v607, %v611
        %v616 = vand.u32 2147483647, %v571
        %vm617 = vcmp.eq.f32.partialorder %v616, 8.507059e+37
        %v618 = vand.u32 %v571, 2147483648
        %v619 = vor.u32 1.1754944e-38, %v618
        %v620 = vsel %vm617, %v619, %v615
        %v621 = vmul.f32 1.0, %v620
        %v622 = vrcp.pop %v572
        %v623 = vmul.f32 %v572, %v622
        %v624 = vsub.f32 1.0, %v623
        %v625 = vmul.f32 %v622, %v624
        %v626 = vadd.f32 %v622, %v625
        %vm627 = vweird.f32 %v572
        %vm628 = vweird.f32 %v622
        %vm629 = vmor %vm627, %vm628
        %v630 = vsel %vm629, %v622, %v626
        %v631 = vand.u32 2147483647, %v572
        %vm632 = vcmp.eq.f32.partialorder %v631, 8.507059e+37
        %v633 = vand.u32 %v572, 2147483648
        %v634 = vor.u32 1.1754944e-38, %v633
        %v635 = vsel %vm632, %v634, %v630
        %v636 = vmul.f32 1.0, %v635
        %v637 = vrcp.pop %v573
        %v638 = vmul.f32 %v573, %v637
        %v639 = vsub.f32 1.0, %v638
        %v640 = vmul.f32 %v637, %v639
        %v641 = vadd.f32 %v637, %v640
        %vm642 = vweird.f32 %v573
        %vm643 = vweird.f32 %v637
        %vm644 = vmor %vm642, %vm643
        %v645 = vsel %vm644, %v637, %v641
        %v646 = vand.u32 2147483647, %v573
        %vm647 = vcmp.eq.f32.partialorder %v646, 8.507059e+37
        %v648 = vand.u32 %v573, 2147483648
        %v649 = vor.u32 1.1754944e-38, %v648
        %v650 = vsel %vm647, %v649, %v645
        %v651 = vmul.f32 1.0, %v650
        %v652 = vrcp.pop %v574
        %v653 = vmul.f32 %v574, %v652
        %v654 = vsub.f32 1.0, %v653
        %v655 = vmul.f32 %v652, %v654
        %v656 = vadd.f32 %v652, %v655
        %vm657 = vweird.f32 %v574
        %vm658 = vweird.f32 %v652
        %vm659 = vmor %vm657, %vm658
        %v660 = vsel %vm659, %v652, %v656
        %v661 = vand.u32 2147483647, %v574
        %vm662 = vcmp.eq.f32.partialorder %v661, 8.507059e+37
        %v663 = vand.u32 %v574, 2147483648
        %v664 = vor.u32 1.1754944e-38, %v663
        %v665 = vsel %vm662, %v664, %v660
        %v666 = vmul.f32 1.0, %v665
        %v667 = vrcp.pop %v575
        %v668 = vmul.f32 %v575, %v667
        %v669 = vsub.f32 1.0, %v668
        %v670 = vmul.f32 %v667, %v669
        %v671 = vadd.f32 %v667, %v670
        %vm672 = vweird.f32 %v575
        %vm673 = vweird.f32 %v667
        %vm674 = vmor %vm672, %vm673
        %v675 = vsel %vm674, %v667, %v671
        %v676 = vand.u32 2147483647, %v575
        %vm677 = vcmp.eq.f32.partialorder %v676, 8.507059e+37
        %v678 = vand.u32 %v575, 2147483648
        %v679 = vor.u32 1.1754944e-38, %v678
        %v680 = vsel %vm677, %v679, %v675
        %v681 = vmul.f32 1.0, %v680
        %v682 = vrcp.pop %v576
        %v683 = vmul.f32 %v576, %v682
        %v684 = vsub.f32 1.0, %v683
        %v685 = vmul.f32 %v682, %v684
        %v686 = vadd.f32 %v682, %v685
        %vm687 = vweird.f32 %v576
        %vm688 = vweird.f32 %v682
        %vm689 = vmor %vm687, %vm688
        %v690 = vsel %vm689, %v682, %v686
        %v691 = vand.u32 2147483647, %v576
        %vm692 = vcmp.eq.f32.partialorder %v691, 8.507059e+37
        %v693 = vand.u32 %v576, 2147483648
        %v694 = vor.u32 1.1754944e-38, %v693
        %v695 = vsel %vm692, %v694, %v690
        %v696 = vmul.f32 1.0, %v695
        %v697 = vld [vmem:[%s3] sm:$0xff]
        %v698 = vld [vmem:[%s3 + $0x8] sm:$0xff]
        %v699 = vld [vmem:[%s3 + $0x10] sm:$0xff]
        %v700 = vld [vmem:[%s3 + $0x18] sm:$0xff]
        %702 = vset.pattern.permute.xlu0 0
        %703 = vperm.xlu0 %702, %v697
        %v704 = vpop.permute.xlu0 %703
        %707 = vset.pattern.permute.xlu0 0
        %708 = vperm.xlu0 %707, %v698
        %v709 = vpop.permute.xlu0 %708
        %712 = vset.pattern.permute.xlu0 0
        %713 = vperm.xlu0 %712, %v699
        %v714 = vpop.permute.xlu0 %713
        %717 = vset.pattern.permute.xlu0 0
        %718 = vperm.xlu0 %717, %v700
        %v719 = vpop.permute.xlu0 %718
        %v721 = vmul.f32 %v704, %v591
        %v722 = vmul.f32 %v704, %v606
        %v723 = vmul.f32 %v709, %v621
        %v724 = vmul.f32 %v709, %v636
        %v725 = vmul.f32 %v714, %v651
        %v726 = vmul.f32 %v714, %v666
        %v727 = vmul.f32 %v719, %v681
        %v728 = vmul.f32 %v719, %v696
        %v729 = vld [vmem:[%s4] sm:$0xff]
        %v730 = vld [vmem:[%s4 + $0x8] sm:$0xff]
        %v731 = vld [vmem:[%s4 + $0x10] sm:$0xff]
        %v732 = vld [vmem:[%s4 + $0x18] sm:$0xff]
        %v733 = vmul.f32 %v591, %v591
        %v734 = vmul.f32 %v606, %v606
        %v735 = vmul.f32 %v621, %v621
        %v736 = vmul.f32 %v636, %v636
        %v737 = vmul.f32 %v651, %v651
        %v738 = vmul.f32 %v666, %v666
        %v739 = vmul.f32 %v681, %v681
        %v740 = vmul.f32 %v696, %v696
        %742 = vset.pattern.permute.xlu0 0
        %743 = vperm.xlu0 %742, %v729
        %v744 = vpop.permute.xlu0 %743
        %747 = vset.pattern.permute.xlu0 0
        %748 = vperm.xlu0 %747, %v730
        %v749 = vpop.permute.xlu0 %748
        %752 = vset.pattern.permute.xlu0 0
        %753 = vperm.xlu0 %752, %v731
        %v754 = vpop.permute.xlu0 %753
        %757 = vset.pattern.permute.xlu0 0
        %758 = vperm.xlu0 %757, %v732
        %v759 = vpop.permute.xlu0 %758
        %v761 = vmul.f32 %v744, %v733
        %v762 = vmul.f32 %v744, %v734
        %v763 = vmul.f32 %v749, %v735
        %v764 = vmul.f32 %v749, %v736
        %v765 = vmul.f32 %v754, %v737
        %v766 = vmul.f32 %v754, %v738
        %v767 = vmul.f32 %v759, %v739
        %v768 = vmul.f32 %v759, %v740
        %v769 = vadd.f32 %v721, %v761
        %v770 = vadd.f32 %v722, %v762
        %v771 = vadd.f32 %v723, %v763
        %v772 = vadd.f32 %v724, %v764
        %v773 = vadd.f32 %v725, %v765
        %v774 = vadd.f32 %v726, %v766
        %v775 = vadd.f32 %v727, %v767
        %v776 = vadd.f32 %v728, %v768
        %v777 = vld [vmem:[%s5] sm:$0xff]
        %v778 = vld [vmem:[%s5 + $0x8] sm:$0xff]
        %v779 = vld [vmem:[%s5 + $0x10] sm:$0xff]
        %v780 = vld [vmem:[%s5 + $0x18] sm:$0xff]
        %v781 = vld [vmem:[%s432] sm:$0x3]
        %783 = vset.pattern.permute.xlu0 0
        %784 = vperm.xlu0 %783, %v777
        %v785 = vpop.permute.xlu0 %784
        %788 = vset.pattern.permute.xlu0 0
        %789 = vperm.xlu0 %788, %v778
        %v790 = vpop.permute.xlu0 %789
        %793 = vset.pattern.permute.xlu0 0
        %794 = vperm.xlu0 %793, %v779
        %v795 = vpop.permute.xlu0 %794
        %798 = vset.pattern.permute.xlu0 0
        %799 = vperm.xlu0 %798, %v780
        %v800 = vpop.permute.xlu0 %799
        %v803 = vperm.slane %v781, 0
        %v804 = vperm.slane %v781, 1
        %v807 = vmul.f32 %v785, %v803
        %v808 = vmul.f32 %v785, %v804
        %v809 = vmul.f32 %v790, %v803
        %v810 = vmul.f32 %v790, %v804
        %v811 = vmul.f32 %v795, %v803
        %v812 = vmul.f32 %v795, %v804
        %v813 = vmul.f32 %v800, %v803
        %v814 = vmul.f32 %v800, %v804
        %v815 = vadd.f32 %v769, %v807
        %v816 = vadd.f32 %v770, %v808
        %v817 = vadd.f32 %v771, %v809
        %v818 = vadd.f32 %v772, %v810
        %v819 = vadd.f32 %v773, %v811
        %v820 = vadd.f32 %v774, %v812
        %v821 = vadd.f32 %v775, %v813
        %v822 = vadd.f32 %v776, %v814
        %v823 = vld [vmem:[%s6] sm:$0xff]
        %v824 = vld [vmem:[%s6 + $0x8] sm:$0xff]
        %v825 = vld [vmem:[%s6 + $0x10] sm:$0xff]
        %v826 = vld [vmem:[%s6 + $0x18] sm:$0xff]
        %v827 = vld [vmem:[%s437] sm:$0x3]
        %829 = vset.pattern.permute.xlu0 0
        %830 = vperm.xlu0 %829, %v823
        %v831 = vpop.permute.xlu0 %830
        %834 = vset.pattern.permute.xlu0 0
        %835 = vperm.xlu0 %834, %v824
        %v836 = vpop.permute.xlu0 %835
        %839 = vset.pattern.permute.xlu0 0
        %840 = vperm.xlu0 %839, %v825
        %v841 = vpop.permute.xlu0 %840
        %844 = vset.pattern.permute.xlu0 0
        %845 = vperm.xlu0 %844, %v826
        %v846 = vpop.permute.xlu0 %845
        %v849 = vperm.slane %v827, 0
        %v850 = vperm.slane %v827, 1
        %v853 = vmul.f32 %v831, %v849
        %v854 = vmul.f32 %v831, %v850
        %v855 = vmul.f32 %v836, %v849
        %v856 = vmul.f32 %v836, %v850
        %v857 = vmul.f32 %v841, %v849
        %v858 = vmul.f32 %v841, %v850
        %v859 = vmul.f32 %v846, %v849
        %v860 = vmul.f32 %v846, %v850
        %v861 = vadd.f32 %v815, %v853
        %v862 = vadd.f32 %v816, %v854
        %v863 = vadd.f32 %v817, %v855
        %v864 = vadd.f32 %v818, %v856
        %v865 = vadd.f32 %v819, %v857
        %v866 = vadd.f32 %v820, %v858
        %v867 = vadd.f32 %v821, %v859
        %v868 = vadd.f32 %v822, %v860
        %v869 = vpack.c.bf16 %v862, %v861
        %v870 = vpack.c.bf16 %v864, %v863
        %v871 = vpack.c.bf16 %v866, %v865
        %v872 = vpack.c.bf16 %v868, %v867
        %873 = vst [vmem:[%s418] sm:$0xff] %v869
        %874 = vst [vmem:[%s418 + $0x8] sm:$0xff] %v870
        %875 = vst [vmem:[%s418 + $0x10] sm:$0xff] %v871
        %876 = vst [vmem:[%s418 + $0x18] sm:$0xff] %v872
        %s877 = sand.u32 %s256, 1
        %s878 = scalar_lea.sflag [#allocation3], %s877
        %s879 = sand.u32 %s256, 1
        %s880 = smul.addr %s879, 32
        %s881 = scalar_lea.vmem [#allocation2], %s880
        %s882 = sand.u32 %s284, 1
        %s883 = scalar_lea.sflag [#allocation5], %s882
        %s884 = sand.u32 %s284, 1
        %s885 = smul.addr %s884, 32
        %s886 = scalar_lea.vmem [#allocation4], %s885
        // Predicated region
        $region57: #{tpu_custom_call.1} parent=55 // pred_check
          %p887 = pneg %p266
        $region58: #{tpu_custom_call.1} parent=55 // pred_check_branch
          %889 = sbr.rel (%p887) target = $region60
        $region59: #{tpu_custom_call.1} parent=55 // pred_region
          %s890 = smul.u32 2, %s33
          %892 = vsyncadd %s878, 0
          %s893 = smul.addr %s32, 8
          %s894 = sadd.s32 %s890, %s893
          %s895 = smul.addr %s894, 4
          %s896 = scalar_lea.hbm %s9, %s895
          %s897 = sshll.u32 %s881, 4
          %s898 = int_to_ptr.vmem [resolvable:$true] %s897
          %s899 = sshll.u32 %s896, 4
          %s900 = int_to_ptr.hbm [resolvable:$true] %s899
          %905 = dma.vmem_to_hbm [thread:$0]  %s898, 512, %s900, %s878, 128, 128, 8
        $region60: #{tpu_custom_call.1} parent=55 // pred_fallthru
          _
        // Predicated region
        $region61: #{tpu_custom_call.1} parent=55 // pred_check
          %p906 = pneg %p294
        $region62: #{tpu_custom_call.1} parent=55 // pred_check_branch
          %908 = sbr.rel (%p906) target = $region64
        $region63: #{tpu_custom_call.1} parent=55 // pred_region
          %s909 = smul.u32 2, %s33
          %911 = vsyncadd %s883, 0
          %s912 = smul.addr %s32, 8
          %s913 = sadd.s32 %s909, %s912
          %s914 = smul.addr %s913, 4
          %s915 = scalar_lea.hbm %s10, %s914
          %s916 = sshll.u32 %s886, 4
          %s917 = int_to_ptr.vmem [resolvable:$true] %s916
          %s918 = sshll.u32 %s915, 4
          %s919 = int_to_ptr.hbm [resolvable:$true] %s918
          %924 = dma.vmem_to_hbm [thread:$0]  %s917, 512, %s919, %s883, 128, 128, 8
        $region64: #{tpu_custom_call.1} parent=55 // pred_fallthru
          _
      $region56: #{tpu_custom_call.1} parent=5 // pred_fallthru
        _
      %p925 = scmp.le.s32.totalorder 2, %s23
      // Predicated region
      $region65: #{tpu_custom_call.1} parent=5 // pred_check
        %p926 = pneg %p925
      $region66: #{tpu_custom_call.1} parent=5 // pred_check_branch
        %928 = sbr.rel (%p926) target = $region68
      $region67: #{tpu_custom_call.1} parent=5 // pred_region
        %s929 = ssub.s32 %s23, 2
        // Predicated region
        $region69: #{tpu_custom_call.1} parent=67 // pred_check
          %p930 = pneg %p272
        $region70: #{tpu_custom_call.1} parent=67 // pred_check_branch
          %932 = sbr.rel (%p930) target = $region72
        $region71: #{tpu_custom_call.1} parent=67 // pred_region
          %s933 = sand.u32 %s257, 1
          %s934 = scalar_lea.sflag [#allocation3], %s933
          %s935 = sand.u32 %s257, 1
          %s936 = smul.addr %s935, 32
          %s937 = scalar_lea.vmem [#allocation2], %s936
          %939 = dma.done %s934, 512
        $region72: #{tpu_custom_call.1} parent=67 // pred_fallthru
          _
        // Predicated region
        $region73: #{tpu_custom_call.1} parent=67 // pred_check
          %p940 = pneg %p300
        $region74: #{tpu_custom_call.1} parent=67 // pred_check_branch
          %942 = sbr.rel (%p940) target = $region76
        $region75: #{tpu_custom_call.1} parent=67 // pred_region
          %s943 = sand.u32 %s285, 1
          %s944 = scalar_lea.sflag [#allocation5], %s943
          %s945 = sand.u32 %s285, 1
          %s946 = smul.addr %s945, 32
          %s947 = scalar_lea.vmem [#allocation4], %s946
          %949 = dma.done %s944, 512
        $region76: #{tpu_custom_call.1} parent=67 // pred_fallthru
          _
      $region68: #{tpu_custom_call.1} parent=5 // pred_fallthru
        _
    $region6: #{tpu_custom_call.1} parent=1 // loop_footer
      %s27 = sadd.s32 1, %s23
    $region7: #{tpu_custom_call.1} parent=1 // loop_footer_branch
      %22 = sbr.rel target = $region3
    $region8: #{tpu_custom_call.1} parent=1 // loop_exit
      _
    %950 = vsyncpa [#allocation3], 1
    %s951 = scalar_lea.sflag [#allocation3], 1
    %952 = vsyncpa %s951, 1
    %953 = vsyncpa [#allocation5], 1
    %s954 = scalar_lea.sflag [#allocation5], 1
    %955 = vsyncpa %s954, 1

</llo_original>
